<compile_context>
chip_gen: v7x
topology: tpu7x:2x2x1
jax: 0.10.0
libtpu: 0.0.40
codegen_flags: <defaults>
</compile_context>

<pallas_src>
import jax
import jax.numpy as jnp
from jax.experimental import pallas as pl
from jax.experimental.pallas import tpu as pltpu


def _choose_tile_hw(HW, C, logits_itemsize, budget_bytes=24 << 20):
    """Largest lane tile (multiple of 128) whose double-buffered DMA fits budget."""
    hw_pad128 = -(-HW // 128) * 128
    per_lane = 2 * (C * logits_itemsize + 4)        # 2x-buffered logits + int32 labels
    max_tile = max(128, (budget_bytes // per_lane) // 128 * 128)
    max_tile = min(max_tile, 1 << 16)               # cap at 64K lanes
    if hw_pad128 <= max_tile:
        return hw_pad128, hw_pad128                 # single spatial tile
    tile = max_tile
    hw_pad = -(-HW // tile) * tile
    return tile, hw_pad


def _make_dice_kernel(C, HW, TILE_HW, n_hw_tiles):
    need_mask = (n_hw_tiles * TILE_HW) != HW        # spatial padding present?

    def kernel(logits_ref, labels_ref, out_ref, inter_ref, psum_ref, tsum_ref):
        hw = pl.program_id(1)

        @pl.when(hw == 0)
        def _():
            inter_ref[...] = jnp.zeros_like(inter_ref)
            psum_ref[...] = jnp.zeros_like(psum_ref)
            tsum_ref[...] = jnp.zeros_like(tsum_ref)

        x = logits_ref[0].astype(jnp.float32)       # (C, TILE_HW) upcast in VMEM
        labels = labels_ref[0]                      # (1, TILE_HW) int32

        # per-pixel softmax over the channel (sublane) axis
        m = jnp.max(x, axis=0, keepdims=True)       # (1, TILE_HW)
        e = jnp.exp(x - m)
        z = jnp.sum(e, axis=0, keepdims=True)       # (1, TILE_HW)
        p = e * pl.reciprocal(z, approx=False)      # exact: keeps 1e-5 tolerance

        if need_mask:
            # padded pixels carry label == -1; zero their probabilities so
            # psum / inter ignore them (tsum is already 0 via the label compare).
            p = jnp.where(labels >= 0, p, 0.0)

        # one-hot membership without materializing a float one-hot tensor
        class_ids = jax.lax.broadcasted_iota(jnp.int32, (C, 1), 0)
        mask = class_ids == labels                  # (C, TILE_HW) bool

        inter_ref[...] += jnp.sum(jnp.where(mask, p, 0.0), axis=1, keepdims=True)
        psum_ref[...] += jnp.sum(p, axis=1, keepdims=True)
        tsum_ref[...] += jnp.sum(jnp.where(mask, 1.0, 0.0), axis=1, keepdims=True)

        @pl.when(hw == n_hw_tiles - 1)
        def _():
            smooth = jnp.float32(1.0)
            dice = (2.0 * inter_ref[...] + smooth) / (
                psum_ref[...] + tsum_ref[...] + smooth)          # (C, 1)
            dice_sum = jnp.sum(dice, keepdims=True)              # (1, 1)
            out_ref[...] = jnp.broadcast_to(dice_sum.reshape(1, 1, 1),
                                            out_ref.shape)

    return kernel


def multi_class_dice_loss(logits_nchw, target_nhw, *, tile_hw=None):
    """logits_nchw: (N, C, H, W) float (any dtype), target_nhw: (N, H, W) int."""
    N, C, H, W = logits_nchw.shape
    HW = H * W
    itemsize = jnp.dtype(logits_nchw.dtype).itemsize

    if tile_hw is None:
        TILE_HW, HW_pad = _choose_tile_hw(HW, C, itemsize)
    else:
        assert tile_hw % 128 == 0
        TILE_HW = tile_hw
        HW_pad = -(-HW // TILE_HW) * TILE_HW
    n_hw_tiles = HW_pad // TILE_HW

    # keep logits in native dtype in HBM; upcast happens per-tile inside the kernel
    logits = logits_nchw.reshape(N, C, HW)
    labels = target_nhw.reshape(N, 1, HW).astype(jnp.int32)
    # TODO(synk): an int8 label path would cut label HBM traffic 4x (mainly v5e).
    if HW_pad != HW:
        logits = jnp.pad(logits, ((0, 0), (0, 0), (0, HW_pad - HW)))
        labels = jnp.pad(labels, ((0, 0), (0, 0), (0, HW_pad - HW)),
                         constant_values=-1)

    # explicit VMEM budget: double-buffered logits + labels tiles, small headroom
    tile_bytes = 2 * C * TILE_HW * itemsize + 2 * TILE_HW * 4 + 2 * 128 * 4
    vmem_limit = int(min(max(tile_bytes + (8 << 20), 16 << 20), 40 << 20))

    kernel = _make_dice_kernel(C, HW, TILE_HW, n_hw_tiles)

    dice_sums = pl.pallas_call(
        kernel,
        out_shape=jax.ShapeDtypeStruct((N, 1, 128), jnp.float32),
        grid_spec=pltpu.PrefetchScalarGridSpec(
            num_scalar_prefetch=0,
            grid=(N, n_hw_tiles),
            in_specs=[
                pl.BlockSpec((1, C, TILE_HW), lambda n, hw: (n, 0, hw)),
                pl.BlockSpec((1, 1, TILE_HW), lambda n, hw: (n, 0, hw)),
            ],
            out_specs=pl.BlockSpec((1, 1, 128), lambda n, hw: (n, 0, 0)),
            scratch_shapes=[
                pltpu.VMEM((C, 1), jnp.float32),   # running intersection sums
                pltpu.VMEM((C, 1), jnp.float32),   # running prob sums
                pltpu.VMEM((C, 1), jnp.float32),   # running target sums
            ],
        ),
        compiler_params=pltpu.CompilerParams(
            dimension_semantics=("parallel", "arbitrary"),
            vmem_limit_bytes=vmem_limit,
        ),
    )(logits, labels)

    # dice_sums[n, 0, 0] = sum_c dice_eff[n, c]
    return 1.0 - jnp.sum(dice_sums[:, 0, 0]) / jnp.float32(N * C)


def _reference(logits_nchw, target_nhw):
    N, C, H, W = logits_nchw.shape
    p = jax.nn.softmax(logits_nchw.astype(jnp.float32), axis=1).reshape(N, C, -1)
    t = jax.nn.one_hot(target_nhw, C, dtype=jnp.float32)       # (N, H, W, C)
    t = jnp.transpose(t, (0, 3, 1, 2)).reshape(N, C, -1)
    smooth = 1.0
    total = 0.0
    for c in range(C):
        inter = jnp.sum(p[:, c] * t[:, c], axis=1)
        eff = (2 * inter + smooth) / (jnp.sum(p[:, c], axis=1) +
                                      jnp.sum(t[:, c], axis=1) + smooth)
        total += 1.0 - jnp.sum(eff) / N
    return total / C


if __name__ == "__main__":
    key = jax.random.PRNGKey(0)
    k1, k2, k3, k4 = jax.random.split(key, 4)

    # main check: N=2, C=4, 16x16
    N, C, H, W = 2, 4, 16, 16
    logits = jax.random.normal(k1, (N, C, H, W), dtype=jnp.float32)
    target = jax.random.randint(k2, (N, H, W), 0, C, dtype=jnp.int32)

    loss = multi_class_dice_loss(logits, target)
    jax.block_until_ready(loss)
    ref = _reference(logits, target)
    assert jnp.allclose(loss, ref, atol=1e-5, rtol=1e-5), (loss, ref)

    # multi-tile spatial reduction path (forced 128-lane tiles -> 2 HW tiles)
    loss_t = multi_class_dice_loss(logits, target, tile_hw=128)
    jax.block_until_ready(loss_t)
    assert jnp.allclose(loss_t, ref, atol=1e-5, rtol=1e-5), (loss_t, ref)

    # ragged spatial size -> exercises padding + masking path (13*13 -> 256 lanes)
    H2 = W2 = 13
    logits2 = jax.random.normal(k3, (N, C, H2, W2), dtype=jnp.float32)
    target2 = jax.random.randint(k4, (N, H2, W2), 0, C, dtype=jnp.int32)
    loss2 = multi_class_dice_loss(logits2, target2)
    jax.block_until_ready(loss2)
    ref2 = _reference(logits2, target2)
    assert jnp.allclose(loss2, ref2, atol=1e-5, rtol=1e-5), (loss2, ref2)

    print("KERNEL_OK")
</pallas_src>

<mosaic_0001>
module attributes {stable_mosaic.version = 11 : i64} {
  func.func @kernel(%arg0: i32, %arg1: i32, %arg2: memref<1x4x256xf32, #tpu.memory_space<vmem>>, %arg3: memref<1x1x256xi32, #tpu.memory_space<vmem>>, %arg4: memref<1x1x128xf32, #tpu.memory_space<vmem>>, %arg5: memref<4x1xf32, #tpu.memory_space<vmem>>, %arg6: memref<4x1xf32, #tpu.memory_space<vmem>>, %arg7: memref<4x1xf32, #tpu.memory_space<vmem>>) attributes {dimension_semantics = [#tpu.dimension_semantics<parallel>, #tpu.dimension_semantics<arbitrary>], iteration_bounds = array<i64: 2, 1>, scalar_prefetch = 0 : i64, scratch_operands = 3 : i64, tpu.core_type = #tpu.core_type<tc>, window_params = [{transform_indices = @transform_0, window_bounds = array<i64: 1, 4, 256>}, {transform_indices = @transform_1, window_bounds = array<i64: 1, 1, 256>}, {transform_indices = @transform_2, window_bounds = array<i64: 1, 1, 128>}]} {
    %c0_i32 = arith.constant 0 : i32
    %0 = arith.cmpi eq, %arg1, %c0_i32 : i32
    %1 = arith.extui %0 : i1 to i32
    %c0_i32_0 = arith.constant 0 : i32
    %2 = arith.cmpi ne, %1, %c0_i32_0 : i32
    scf.if %2 {
      %cst_27 = arith.constant 0.000000e+00 : f32
      %44 = vector.broadcast %cst_27 : f32 to vector<4x1xf32>
      %c0_28 = arith.constant 0 : index
      %c0_29 = arith.constant 0 : index
      %45 = vector.load %arg5[%c0_28, %c0_29] : memref<4x1xf32, #tpu.memory_space<vmem>>, vector<4x1xf32>
      tpu.vector_store %arg5[%c0_28, %c0_29], %44 {strides = array<i32>} : memref<4x1xf32, #tpu.memory_space<vmem>>, vector<4x1xf32>,
      %cst_30 = arith.constant 0.000000e+00 : f32
      %46 = vector.broadcast %cst_30 : f32 to vector<4x1xf32>
      %c0_31 = arith.constant 0 : index
      %c0_32 = arith.constant 0 : index
      %47 = vector.load %arg6[%c0_31, %c0_32] : memref<4x1xf32, #tpu.memory_space<vmem>>, vector<4x1xf32>
      tpu.vector_store %arg6[%c0_31, %c0_32], %46 {strides = array<i32>} : memref<4x1xf32, #tpu.memory_space<vmem>>, vector<4x1xf32>,
      %cst_33 = arith.constant 0.000000e+00 : f32
      %48 = vector.broadcast %cst_33 : f32 to vector<4x1xf32>
      %c0_34 = arith.constant 0 : index
      %c0_35 = arith.constant 0 : index
      %49 = vector.load %arg7[%c0_34, %c0_35] : memref<4x1xf32, #tpu.memory_space<vmem>>, vector<4x1xf32>
      tpu.vector_store %arg7[%c0_34, %c0_35], %48 {strides = array<i32>} : memref<4x1xf32, #tpu.memory_space<vmem>>, vector<4x1xf32>,
    } else {
    }
    %c0 = arith.constant 0 : index
    %c0_1 = arith.constant 0 : index
    %c0_2 = arith.constant 0 : index
    %3 = vector.load %arg2[%c0, %c0_1, %c0_2] : memref<1x4x256xf32, #tpu.memory_space<vmem>>, vector<1x4x256xf32>
    %4 = vector.shape_cast %3 : vector<1x4x256xf32> to vector<4x256xf32>
    %c0_3 = arith.constant 0 : index
    %c0_4 = arith.constant 0 : index
    %c0_5 = arith.constant 0 : index
    %5 = vector.load %arg3[%c0_3, %c0_4, %c0_5] : memref<1x1x256xi32, #tpu.memory_space<vmem>>, vector<1x1x256xi32>
    %6 = vector.shape_cast %5 : vector<1x1x256xi32> to vector<1x256xi32>
    %cst = arith.constant dense<0xFF800000> : vector<256xf32>
    %7 = vector.multi_reduction <maximumf>, %4, %cst [0] : vector<4x256xf32> to vector<256xf32>
    %8 = vector.shape_cast %7 : vector<256xf32> to vector<1x256xf32>
    %9 = vector.broadcast %8 : vector<1x256xf32> to vector<4x256xf32>
    %10 = arith.subf %4, %9 : vector<4x256xf32>
    %11 = math.exp %10 : vector<4x256xf32>
    %cst_6 = arith.constant dense<0.000000e+00> : vector<256xf32>
    %12 = vector.multi_reduction <add>, %11, %cst_6 [0] : vector<4x256xf32> to vector<256xf32>
    %13 = vector.shape_cast %12 : vector<256xf32> to vector<1x256xf32>
    %14 = tpu.reciprocal %13 : vector<1x256xf32> -> vector<1x256xf32>
    %15 = vector.broadcast %14 : vector<1x256xf32> to vector<4x256xf32>
    %16 = arith.mulf %11, %15 : vector<4x256xf32>
    %17 = tpu.iota {dimensions = array<i32: 0>} : vector<4x1xi32>
    %18 = vector.broadcast %17 : vector<4x1xi32> to vector<4x256xi32>
    %19 = vector.broadcast %6 : vector<1x256xi32> to vector<4x256xi32>
    %20 = arith.cmpi eq, %18, %19 : vector<4x256xi32>
    %c0_7 = arith.constant 0 : index
    %c0_8 = arith.constant 0 : index
    %21 = vector.load %arg5[%c0_7, %c0_8] : memref<4x1xf32, #tpu.memory_space<vmem>>, vector<4x1xf32>
    %cst_9 = arith.constant 0.000000e+00 : f32
    %22 = vector.broadcast %cst_9 : f32 to vector<4x256xf32>
    %23 = arith.select %20, %16, %22 : vector<4x256xi1>, vector<4x256xf32>
    %cst_10 = arith.constant dense<0.000000e+00> : vector<4xf32>
    %24 = vector.multi_reduction <add>, %23, %cst_10 [1] : vector<4x256xf32> to vector<4xf32>
    %25 = vector.shape_cast %24 : vector<4xf32> to vector<4x1xf32>
    %26 = arith.addf %21, %25 : vector<4x1xf32>
    %c0_11 = arith.constant 0 : index
    %c0_12 = arith.constant 0 : index
    %27 = vector.load %arg5[%c0_11, %c0_12] : memref<4x1xf32, #tpu.memory_space<vmem>>, vector<4x1xf32>
    tpu.vector_store %arg5[%c0_11, %c0_12], %26 {strides = array<i32>} : memref<4x1xf32, #tpu.memory_space<vmem>>, vector<4x1xf32>,
    %c0_13 = arith.constant 0 : index
    %c0_14 = arith.constant 0 : index
    %28 = vector.load %arg6[%c0_13, %c0_14] : memref<4x1xf32, #tpu.memory_space<vmem>>, vector<4x1xf32>
    %cst_15 = arith.constant dense<0.000000e+00> : vector<4xf32>
    %29 = vector.multi_reduction <add>, %16, %cst_15 [1] : vector<4x256xf32> to vector<4xf32>
    %30 = vector.shape_cast %29 : vector<4xf32> to vector<4x1xf32>
    %31 = arith.addf %28, %30 : vector<4x1xf32>
    %c0_16 = arith.constant 0 : index
    %c0_17 = arith.constant 0 : index
    %32 = vector.load %arg6[%c0_16, %c0_17] : memref<4x1xf32, #tpu.memory_space<vmem>>, vector<4x1xf32>
    tpu.vector_store %arg6[%c0_16, %c0_17], %31 {strides = array<i32>} : memref<4x1xf32, #tpu.memory_space<vmem>>, vector<4x1xf32>,
    %c0_18 = arith.constant 0 : index
    %c0_19 = arith.constant 0 : index
    %33 = vector.load %arg7[%c0_18, %c0_19] : memref<4x1xf32, #tpu.memory_space<vmem>>, vector<4x1xf32>
    %cst_20 = arith.constant 1.000000e+00 : f32
    %cst_21 = arith.constant 0.000000e+00 : f32
    %34 = vector.broadcast %cst_20 : f32 to vector<4x256xf32>
    %35 = vector.broadcast %cst_21 : f32 to vector<4x256xf32>
    %36 = arith.select %20, %34, %35 : vector<4x256xi1>, vector<4x256xf32>
    %cst_22 = arith.constant dense<0.000000e+00> : vector<4xf32>
    %37 = vector.multi_reduction <add>, %36, %cst_22 [1] : vector<4x256xf32> to vector<4xf32>
    %38 = vector.shape_cast %37 : vector<4xf32> to vector<4x1xf32>
    %39 = arith.addf %33, %38 : vector<4x1xf32>
    %c0_23 = arith.constant 0 : index
    %c0_24 = arith.constant 0 : index
    %40 = vector.load %arg7[%c0_23, %c0_24] : memref<4x1xf32, #tpu.memory_space<vmem>>, vector<4x1xf32>
    tpu.vector_store %arg7[%c0_23, %c0_24], %39 {strides = array<i32>} : memref<4x1xf32, #tpu.memory_space<vmem>>, vector<4x1xf32>,
    %c0_i32_25 = arith.constant 0 : i32
    %41 = arith.cmpi eq, %arg1, %c0_i32_25 : i32
    %42 = arith.extui %41 : i1 to i32
    %c0_i32_26 = arith.constant 0 : i32
    %43 = arith.cmpi ne, %42, %c0_i32_26 : i32
    scf.if %43 {
      %c0_27 = arith.constant 0 : index
      %c0_28 = arith.constant 0 : index
      %44 = vector.load %arg5[%c0_27, %c0_28] : memref<4x1xf32, #tpu.memory_space<vmem>>, vector<4x1xf32>
      %cst_29 = arith.constant 2.000000e+00 : f32
      %45 = vector.broadcast %cst_29 : f32 to vector<4x1xf32>
      %46 = arith.mulf %45, %44 : vector<4x1xf32>
      %cst_30 = arith.constant 1.000000e+00 : f32
      %47 = vector.broadcast %cst_30 : f32 to vector<4x1xf32>
      %48 = arith.addf %46, %47 : vector<4x1xf32>
      %c0_31 = arith.constant 0 : index
      %c0_32 = arith.constant 0 : index
      %49 = vector.load %arg6[%c0_31, %c0_32] : memref<4x1xf32, #tpu.memory_space<vmem>>, vector<4x1xf32>
      %c0_33 = arith.constant 0 : index
      %c0_34 = arith.constant 0 : index
      %50 = vector.load %arg7[%c0_33, %c0_34] : memref<4x1xf32, #tpu.memory_space<vmem>>, vector<4x1xf32>
      %51 = arith.addf %49, %50 : vector<4x1xf32>
      %cst_35 = arith.constant 1.000000e+00 : f32
      %52 = vector.broadcast %cst_35 : f32 to vector<4x1xf32>
      %53 = arith.addf %51, %52 : vector<4x1xf32>
      %54 = arith.divf %48, %53 : vector<4x1xf32>
      %55 = vector.shape_cast %54 : vector<4x1xf32> to vector<1x4x1xf32>
      %cst_36 = arith.constant dense<0.000000e+00> : vector<1xf32>
      %56 = vector.multi_reduction <add>, %55, %cst_36 [1, 2] : vector<1x4x1xf32> to vector<1xf32>
      %57 = vector.shape_cast %56 : vector<1xf32> to vector<1x1x1xf32>
      %58 = vector.extract %57[0, 0, 0] : f32 from vector<1x1x1xf32>
      %59 = vector.broadcast %58 : f32 to vector<1x1xf32>
      %60 = vector.shape_cast %59 : vector<1x1xf32> to vector<1x1x1xf32>
      %61 = vector.shape_cast %60 : vector<1x1x1xf32> to vector<1x1x1xf32>
      %62 = vector.broadcast %61 : vector<1x1x1xf32> to vector<1x1x128xf32>
      %c0_37 = arith.constant 0 : index
      %c0_38 = arith.constant 0 : index
      %c0_39 = arith.constant 0 : index
      %63 = vector.load %arg4[%c0_37, %c0_38, %c0_39] : memref<1x1x128xf32, #tpu.memory_space<vmem>>, vector<1x1x128xf32>
      tpu.vector_store %arg4[%c0_37, %c0_38, %c0_39], %62 {strides = array<i32>} : memref<1x1x128xf32, #tpu.memory_space<vmem>>, vector<1x1x128xf32>,
    } else {
    }
    return
  }
  func.func @transform_0(%arg0: i32, %arg1: i32) -> (i32, i32, i32) {
    %c0_i32 = arith.constant 0 : i32
    %c0_i32_0 = arith.constant 0 : i32
    return %arg0, %c0_i32, %arg1 : i32, i32, i32
  }
  func.func @transform_1(%arg0: i32, %arg1: i32) -> (i32, i32, i32) {
    %c0_i32 = arith.constant 0 : i32
    %c0_i32_0 = arith.constant 0 : i32
    return %arg0, %c0_i32, %arg1 : i32, i32, i32
  }
  func.func @transform_2(%arg0: i32, %arg1: i32) -> (i32, i32, i32) {
    %c0_i32 = arith.constant 0 : i32
    %c0_i32_0 = arith.constant 0 : i32
    %c0_i32_1 = arith.constant 0 : i32
    return %arg0, %c0_i32, %c0_i32_0 : i32, i32, i32
  }
}

</mosaic_0001>

<llo_original>
// kernel: tpu_custom_call.1
$region0: #{tpu_custom_call.1}
  #allocation0 [shape = 'u32[]', space=smem, size = 0x4, offset = 0x4, fixed_abs, tag = 'smem constant byte address 0x4 - core index']
  #allocation1 [shape = 'u32[144,128]{1,0:T(1,128)}', space=vmem, size = 0x12000, scoped, tag = 'internal scratch']
  #allocation2 [shape = 'f32[4,1]{1,0:T(4,128)}', space=vmem, size = 0x800, scoped, tag = 'scratch operand']
  #allocation3 [shape = 'f32[4,1]{1,0:T(4,128)}', space=vmem, size = 0x800, scoped, tag = 'scratch operand']
  #allocation4 [shape = 'f32[4,1]{1,0:T(4,128)}', space=vmem, size = 0x800, scoped, tag = 'scratch operand']
  %s0 = inlined_call_operand.hbm [shape: f32[2,4,256], index: 0, kind: input, shape index: {}]
  %s1 = inlined_call_operand.hbm [shape: s32[2,1,256], index: 1, kind: input, shape index: {}]
  %s2 = inlined_call_operand.hbm [shape: f32[2,1,128], index: 2, kind: output, shape index: {}]
  %s3 = sld [smem:[#allocation0]]
  $region57: #{tpu_custom_call.1} parent=0
    _
  %s5 = ssub.s32 1, %s3
  %s6 = scalar_select 0, %s5, %s3
  $region1: #{tpu_custom_call.1} parent=0
    #allocation5 [shape = 'u8[8192]{0}', space=vmem, size = 0x2000, scoped, tag = 'input window, operand 0']
    #allocation6 [shape = 's32[2]{0}', space=sflag, size = 0x8, scoped, tag = 'scoped memory for tpu_custom_call.1']
    #allocation7 [shape = 's32[2]{0}', space=sflag, size = 0x8, scoped, tag = 'scoped memory for tpu_custom_call.1']
    #allocation8 [shape = 'u8[2048]{0}', space=vmem, size = 0x800, scoped, tag = 'input window, operand 1']
    #allocation9 [shape = 's32[2]{0}', space=sflag, size = 0x8, scoped, tag = 'scoped memory for tpu_custom_call.1']
    #allocation10 [shape = 'u8[1024]{0}', space=vmem, size = 0x400, scoped, tag = 'output window, operand 0']
    %7 = vsyncpa [#allocation6], 0
    %s8 = scalar_lea.sflag [#allocation6], 1
    %9 = vsyncpa %s8, 0
    %10 = vsyncpa [#allocation9], 0
    %s11 = scalar_lea.sflag [#allocation9], 1
    %12 = vsyncpa %s11, 0
    %13 = vsyncpa [#allocation7], 0
    %s14 = scalar_lea.sflag [#allocation7], 1
    %15 = vsyncpa %s14, 0
    loop: start=0, step=1, limit=4
    $region2: #{tpu_custom_call.1} parent=1 // loop_pre_header
      _
    $region3: #{tpu_custom_call.1} parent=1 // loop_header
      %s17 = sphi 0, %s21
      %p18 = scmp.ge.s32.totalorder %s17, 4
      %s24 = sphi 0, %s36
      %s25 = sphi 0, %s32
      %s26 = sphi 0, %s24
      %s27 = sphi 0, %s25
      %s28 = sphi 0, %s26
      %s29 = sphi 0, %s27
      %s41 = sphi 0, %s43
      %s44 = sphi 0, %s41
      %s45 = sphi 0, %s44
      %s61 = sphi 0, %s45
      %s69 = sphi 0, %s71
      %s72 = sphi 0, %s69
      %s73 = sphi 0, %s72
      %s89 = sphi 0, %s73
      %s95 = sphi 0, %s97
      %s98 = sphi 0, %s95
      %s99 = sphi 0, %s98
      %s115 = sphi 0, %s99
    $region4: #{tpu_custom_call.1} parent=1 // loop_header_branch
      %20 = sbr.rel (%p18) target = $region8
    $region5: #{tpu_custom_call.1} parent=1 // loop_body
      %s22 = ssub.s32 %s17, 1
      %s23 = ssub.s32 %s17, 2
      %s30 = sadd.s32 1, %s25
      %p31 = scmp.ge.s32.totalorder %s30, 1
      %s32 = scalar_select %p31, 0, %s30
      %s33 = sadd.s32 1, %s24
      %s34 = scalar_select %p31, %s33, %s24
      %p35 = scmp.ge.s32.totalorder %s34, 2
      %s36 = scalar_select %p35, 0, %s34
      %s37 = ssub.s32 %s24, %s36
      %s38 = ssub.s32 %s25, %s32
      %s39 = sor.u32 %s37, %s38
      %p40 = scmp.eq.s32.totalorder %s39, 0
      %s42 = sadd.s32 %s41, 1
      %s43 = scalar_select %p40, %s41, %s42
      %p46 = pneg %p40
      %p47 = scmp.eq.s32.totalorder %s17, 1
      %p48 = por %p46, %p47
      %p49 = scmp.ne.s32.totalorder %s41, %s44
      %p50 = scmp.eq.s32.totalorder %s17, 0
      %p51 = por %p49, %p50
      %p52 = scmp.ne.s32.totalorder %s41, %s44
      %p53 = scmp.eq.s32.totalorder %s22, 1
      %p54 = por %p52, %p53
      %p55 = scmp.ne.s32.totalorder %s44, %s45
      %p56 = scmp.eq.s32.totalorder %s22, 0
      %p57 = por %p55, %p56
      %p58 = scmp.ne.s32.totalorder %s44, %s45
      %p59 = scmp.eq.s32.totalorder %s23, 1
      %p60 = por %p58, %p59
      %p62 = scmp.ne.s32.totalorder %s45, %s61
      %p63 = scmp.eq.s32.totalorder %s23, 0
      %p64 = por %p62, %p63
      %s65 = ssub.s32 %s24, %s36
      %s66 = ssub.s32 %s25, %s32
      %s67 = sor.u32 %s65, %s66
      %p68 = scmp.eq.s32.totalorder %s67, 0
      %s70 = sadd.s32 %s69, 1
      %s71 = scalar_select %p68, %s69, %s70
      %p74 = pneg %p68
      %p75 = scmp.eq.s32.totalorder %s17, 1
      %p76 = por %p74, %p75
      %p77 = scmp.ne.s32.totalorder %s69, %s72
      %p78 = scmp.eq.s32.totalorder %s17, 0
      %p79 = por %p77, %p78
      %p80 = scmp.ne.s32.totalorder %s69, %s72
      %p81 = scmp.eq.s32.totalorder %s22, 1
      %p82 = por %p80, %p81
      %p83 = scmp.ne.s32.totalorder %s72, %s73
      %p84 = scmp.eq.s32.totalorder %s22, 0
      %p85 = por %p83, %p84
      %p86 = scmp.ne.s32.totalorder %s72, %s73
      %p87 = scmp.eq.s32.totalorder %s23, 1
      %p88 = por %p86, %p87
      %p90 = scmp.ne.s32.totalorder %s73, %s89
      %p91 = scmp.eq.s32.totalorder %s23, 0
      %p92 = por %p90, %p91
      %s93 = ssub.s32 %s24, %s36
      %p94 = scmp.eq.s32.totalorder %s93, 0
      %s96 = sadd.s32 %s95, 1
      %s97 = scalar_select %p94, %s95, %s96
      %p100 = pneg %p94
      %p101 = scmp.eq.s32.totalorder %s17, 1
      %p102 = por %p100, %p101
      %p103 = scmp.ne.s32.totalorder %s95, %s98
      %p104 = scmp.eq.s32.totalorder %s17, 0
      %p105 = por %p103, %p104
      %p106 = scmp.ne.s32.totalorder %s95, %s98
      %p107 = scmp.eq.s32.totalorder %s22, 1
      %p108 = por %p106, %p107
      %p109 = scmp.ne.s32.totalorder %s98, %s99
      %p110 = scmp.eq.s32.totalorder %s22, 0
      %p111 = por %p109, %p110
      %p112 = scmp.ne.s32.totalorder %s98, %s99
      %p113 = scmp.eq.s32.totalorder %s23, 1
      %p114 = por %p112, %p113
      %p116 = scmp.ne.s32.totalorder %s99, %s115
      %p117 = scmp.eq.s32.totalorder %s23, 0
      %p118 = por %p116, %p117
      %p119 = scmp.le.s32.totalorder 1, %s17
      %p120 = scmp.lt.s32.totalorder %s17, 3
      %p121 = pnand %p119, %p120
      %p122 = pneg %p121
      // Predicated region
      $region9: #{tpu_custom_call.1} parent=5 // pred_check
        _
      $region10: #{tpu_custom_call.1} parent=5 // pred_check_branch
        %124 = sbr.rel (%p121) target = $region12
      $region11: #{tpu_custom_call.1} parent=5 // pred_region
        %s125 = ssub.s32 %s17, 1
      $region12: #{tpu_custom_call.1} parent=5 // pred_fallthru
        _
      %p126 = scmp.lt.s32.totalorder %s17, 2
      // Predicated region
      $region13: #{tpu_custom_call.1} parent=5 // pred_check
        %p127 = pneg %p126
      $region14: #{tpu_custom_call.1} parent=5 // pred_check_branch
        %129 = sbr.rel (%p127) target = $region16
      $region15: #{tpu_custom_call.1} parent=5 // pred_region
        // Predicated region
        $region17: #{tpu_custom_call.1} parent=15 // pred_check
          %p130 = pneg %p51
        $region18: #{tpu_custom_call.1} parent=15 // pred_check_branch
          %132 = sbr.rel (%p130) target = $region20
        $region19: #{tpu_custom_call.1} parent=15 // pred_region
          %s133 = sand.u32 %s41, 1
          %s134 = scalar_lea.sflag [#allocation6], %s133
          %s135 = sand.u32 %s41, 1
          %s136 = smul.addr %s135, 8
          %s137 = scalar_lea.vmem [#allocation5], %s136
          %s138 = smul.u32 2, %s25
          %s140 = ssub.s32 128, 128
          %141 = vsyncadd %s134, %s140
          %s142 = smul.addr %s24, 2
          %s143 = sadd.s32 %s138, %s142
          %s144 = smul.addr %s143, 64
          %s145 = scalar_lea.hbm %s0, %s144
          %s147 = sshll.u32 %s137, 4
          %s148 = int_to_ptr.vmem [resolvable:$true] %s147
          %150 = dma.hbm_to_vmem [thread:$0]  %s145, 128, %s148, %s134
        $region20: #{tpu_custom_call.1} parent=15 // pred_fallthru
          _
        // Predicated region
        $region21: #{tpu_custom_call.1} parent=15 // pred_check
          %p151 = pneg %p79
        $region22: #{tpu_custom_call.1} parent=15 // pred_check_branch
          %153 = sbr.rel (%p151) target = $region24
        $region23: #{tpu_custom_call.1} parent=15 // pred_region
          %s154 = sand.u32 %s69, 1
          %s155 = scalar_lea.sflag [#allocation9], %s154
          %s156 = sand.u32 %s69, 1
          %s157 = smul.addr %s156, 2
          %s158 = scalar_lea.vmem [#allocation8], %s157
          %s159 = smul.u32 2, %s25
          %s161 = ssub.s32 32, 32
          %162 = vsyncadd %s155, %s161
          %s163 = smul.addr %s24, 2
          %s164 = sadd.s32 %s159, %s163
          %s165 = smul.addr %s164, 16
          %s166 = scalar_lea.hbm %s1, %s165
          %s168 = sshll.u32 %s158, 4
          %s169 = int_to_ptr.vmem [resolvable:$true] %s168
          %171 = dma.hbm_to_vmem [thread:$0]  %s166, 32, %s169, %s155
        $region24: #{tpu_custom_call.1} parent=15 // pred_fallthru
          _
      $region16: #{tpu_custom_call.1} parent=5 // pred_fallthru
        _
      %p172 = scmp.le.s32.totalorder 1, %s17
      %p173 = scmp.lt.s32.totalorder %s17, 3
      %p174 = pnand %p172, %p173
      %p175 = pneg %p174
      // Predicated region
      $region25: #{tpu_custom_call.1} parent=5 // pred_check
        _
      $region26: #{tpu_custom_call.1} parent=5 // pred_check_branch
        %177 = sbr.rel (%p174) target = $region28
      $region27: #{tpu_custom_call.1} parent=5 // pred_region
        %s178 = ssub.s32 %s17, 1
        %s179 = sand.u32 %s44, 1
        %s180 = scalar_lea.sflag [#allocation6], %s179
        %s181 = sand.u32 %s44, 1
        %s182 = smul.addr %s181, 8
        %s183 = scalar_lea.vmem [#allocation5], %s182
        // Predicated region
        $region29: #{tpu_custom_call.1} parent=27 // pred_check
          %p184 = pneg %p57
        $region30: #{tpu_custom_call.1} parent=27 // pred_check_branch
          %186 = sbr.rel (%p184) target = $region32
        $region31: #{tpu_custom_call.1} parent=27 // pred_region
          %187 = dma.done %s180, 128
        $region32: #{tpu_custom_call.1} parent=27 // pred_fallthru
          _
        %s188 = sand.u32 %s72, 1
        %s189 = scalar_lea.sflag [#allocation9], %s188
        %s190 = sand.u32 %s72, 1
        %s191 = smul.addr %s190, 2
        %s192 = scalar_lea.vmem [#allocation8], %s191
        // Predicated region
        $region33: #{tpu_custom_call.1} parent=27 // pred_check
          %p193 = pneg %p85
        $region34: #{tpu_custom_call.1} parent=27 // pred_check_branch
          %195 = sbr.rel (%p193) target = $region36
        $region35: #{tpu_custom_call.1} parent=27 // pred_region
          %196 = dma.done %s189, 32
        $region36: #{tpu_custom_call.1} parent=27 // pred_fallthru
          _
        %s197 = sand.u32 %s44, 1
        %s198 = scalar_lea.sflag [#allocation6], %s197
        %s199 = sand.u32 %s44, 1
        %s200 = smul.addr %s199, 8
        %s201 = scalar_lea.vmem [#allocation5], %s200
        %p202 = pneg %p57
        %p203 = pneg %p54
        %s204 = sand.u32 %s72, 1
        %s205 = scalar_lea.sflag [#allocation9], %s204
        %s206 = sand.u32 %s72, 1
        %s207 = smul.addr %s206, 2
        %s208 = scalar_lea.vmem [#allocation8], %s207
        %p209 = pneg %p85
        %p210 = pneg %p82
        %p211 = pneg %p111
        %p212 = pneg %p108
        %s213 = sand.u32 %s98, 1
        %s214 = scalar_lea.sflag [#allocation7], %s213
        %s215 = sand.u32 %s98, 1
        %s216 = scalar_lea.vmem [#allocation10], %s215
        %s217 = smul.u32 2, %s27
        %s218 = smul.u32 2, %s27
        %p219 = scmp.eq.s32.totalorder %s27, 0
        // Predicated region
        $region37: #{tpu_custom_call.1} parent=27 // pred_check
          %p220 = pneg %p219
        $region38: #{tpu_custom_call.1} parent=27 // pred_check_branch
          %222 = sbr.rel (%p220) target = $region40
        $region39: #{tpu_custom_call.1} parent=27 // pred_region
          %vm223 = vcmask 3072
          %224 = vst.msk [vmem:[#allocation2] sm:$0xf] %vm223, 0.0
          %225 = vst.msk [vmem:[#allocation3] sm:$0xf] %vm223, 0.0
          %226 = vst.msk [vmem:[#allocation4] sm:$0xf] %vm223, 0.0
        $region40: #{tpu_custom_call.1} parent=27 // pred_fallthru
          _
        %v227 = vld [vmem:[%s183] sm:$0xff]
        %v228 = vld [vmem:[%s192] sm:$0x3]
        %v230 = vcombine.high %v227, %v227
        %vm232 = vcmask 1043456
        %v233 = vsel %vm232, %v227, -inf
        %v234 = vrot.slane %v233, 4
        %v235 = vmax.f32 %v233, %v234
        %v236 = vrot.slane %v235, 2
        %v237 = vmax.f32 %v235, %v236
        %v238 = vrot.slane %v237, 1
        %v239 = vmax.f32 %v237, %v238
        %v240 = vsel %vm232, %v230, -inf
        %v241 = vrot.slane %v240, 4
        %v242 = vmax.f32 %v240, %v241
        %v243 = vrot.slane %v242, 2
        %v244 = vmax.f32 %v242, %v243
        %v245 = vrot.slane %v244, 1
        %v246 = vmax.f32 %v244, %v245
        %v249 = vcombine.low %v239, %v246
        %v251 = vsub.f32 %v227, %v249
        %v252 = vmul.f32 %v251, 1.442695
        %v253 = vpow.pop %v252
        %v255 = vcombine.high %v253, %v253
        %v257 = vsel %vm232, %v253, 0.0
        %v258 = vrot.slane %v257, 4
        %v259 = vadd.f32 %v257, %v258
        %v260 = vrot.slane %v259, 2
        %v261 = vadd.f32 %v259, %v260
        %v262 = vrot.slane %v261, 1
        %v263 = vadd.f32 %v261, %v262
        %v264 = vsel %vm232, %v255, 0.0
        %v265 = vrot.slane %v264, 4
        %v266 = vadd.f32 %v264, %v265
        %v267 = vrot.slane %v266, 2
        %v268 = vadd.f32 %v266, %v267
        %v269 = vrot.slane %v268, 1
        %v270 = vadd.f32 %v268, %v269
        %v271 = vrcp.pop %v263
        %v272 = vrcp.pop %v270
        %v275 = vcombine.low %v271, %v272
        %v277 = vmul.f32 %v253, %v275
        %v278 = vlaneseq
        %v279 = vshrl.u32 %v278, 7
        %v280 = vlaneseq
        %v281 = vshrl.u32 %v280, 7
        %v282 = vsub.s32 0, %v281
        %v283 = vrot.slane %v228, %v282
        %v284 = vlaneseq
        %v285 = vshrl.u32 %v284, 7
        %v286 = vsub.s32 1, %v285
        %v287 = vrot.slane %v228, %v286
        %vm288 = vcmp.eq.s32.totalorder %v279, %v283
        %vm289 = vcmp.eq.s32.totalorder %v279, %v287
        %v290 = vld [vmem:[#allocation2] sm:$0xf]
        %v292 = vcombine.high %v277, %v277
        %v294 = vsel %vm288, %v277, 0.0
        %v295 = vsel %vm289, %v292, 0.0
        %v296 = vsel %vm232, %v294, 0.0
        %v297 = vsel %vm232, %v295, 0.0
        %v298 = vadd.f32 %v296, %v297
        %299 = vadd.xlane.f32.xlu0 %v298
        %v300 = vpop.xlane.xlu0 %299
        %v301 = vadd.f32 %v290, %v300
        %vm302 = vcmask 3072
        %303 = vst.msk [vmem:[#allocation2] sm:$0xf] %vm302, %v301
        %v304 = vld [vmem:[#allocation3] sm:$0xf]
        %v305 = vsel %vm232, %v277, 0.0
        %v306 = vsel %vm232, %v292, 0.0
        %v307 = vadd.f32 %v305, %v306
        %308 = vadd.xlane.f32.xlu0 %v307
        %v309 = vpop.xlane.xlu0 %308
        %v310 = vadd.f32 %v304, %v309
        %311 = vst.msk [vmem:[#allocation3] sm:$0xf] %vm302, %v310
        %v312 = vld [vmem:[#allocation4] sm:$0xf]
        %v313 = vsel %vm288, 1.0, 0.0
        %v314 = vsel %vm289, 1.0, 0.0
        %v315 = vsel %vm232, %v313, 0.0
        %v316 = vsel %vm232, %v314, 0.0
        %v317 = vadd.f32 %v315, %v316
        %318 = vadd.xlane.f32.xlu0 %v317
        %v319 = vpop.xlane.xlu0 %318
        %v320 = vadd.f32 %v312, %v319
        %321 = vst.msk [vmem:[#allocation4] sm:$0xf] %vm302, %v320
        // Predicated region
        $region41: #{tpu_custom_call.1} parent=27 // pred_check
          %p322 = pneg %p219
        $region42: #{tpu_custom_call.1} parent=27 // pred_check_branch
          %324 = sbr.rel (%p322) target = $region44
        $region43: #{tpu_custom_call.1} parent=27 // pred_region
          %v325 = vld [vmem:[#allocation2] sm:$0xf]
          %v326 = vmul.f32 %v325, 2.0
          %v327 = vadd.f32 %v326, 1.0
          %v328 = vld [vmem:[#allocation3] sm:$0xf]
          %v329 = vld [vmem:[#allocation4] sm:$0xf]
          %v330 = vadd.f32 %v328, %v329
          %v331 = vadd.f32 %v330, 1.0
          %v332 = vrcp.pop %v331
          %v333 = vmul.f32 %v327, %v332
          %v334 = vsel %vm302, %v333, 0.0
          %335 = vadd.xlane.f32.xlu0 %v334
          %v336 = vpop.xlane.xlu0 %335
          %v337 = vrot.slane %v336, 4
          %v338 = vadd.f32 %v336, %v337
          %v339 = vrot.slane %v338, 2
          %v340 = vadd.f32 %v338, %v339
          %v341 = vrot.slane %v340, 1
          %v342 = vadd.f32 %v340, %v341
          %s343 = vtos %v342
          %v344 = vstv %s343
          %345 = vst [vmem:[%s216] sm:$0x1] %v344
        $region44: #{tpu_custom_call.1} parent=27 // pred_fallthru
          _
        %s346 = sand.u32 %s98, 1
        %s347 = scalar_lea.sflag [#allocation7], %s346
        %s348 = sand.u32 %s98, 1
        %s349 = scalar_lea.vmem [#allocation10], %s348
        // Predicated region
        $region45: #{tpu_custom_call.1} parent=27 // pred_check
          %p350 = pneg %p108
        $region46: #{tpu_custom_call.1} parent=27 // pred_check_branch
          %352 = sbr.rel (%p350) target = $region48
        $region47: #{tpu_custom_call.1} parent=27 // pred_region
          %s354 = ssub.s32 16, 16
          %355 = vsyncadd %s347, %s354
          %s356 = smul.addr %s26, 16
          %s357 = scalar_lea.hbm %s2, %s356
          %s359 = sshll.u32 %s349, 4
          %s360 = int_to_ptr.vmem [resolvable:$true] %s359
          %362 = dma.vmem_to_hbm [thread:$0]  %s360, 16, %s357, %s347
        $region48: #{tpu_custom_call.1} parent=27 // pred_fallthru
          _
      $region28: #{tpu_custom_call.1} parent=5 // pred_fallthru
        _
      %p363 = scmp.le.s32.totalorder 2, %s17
      // Predicated region
      $region49: #{tpu_custom_call.1} parent=5 // pred_check
        %p364 = pneg %p363
      $region50: #{tpu_custom_call.1} parent=5 // pred_check_branch
        %366 = sbr.rel (%p364) target = $region52
      $region51: #{tpu_custom_call.1} parent=5 // pred_region
        %s367 = ssub.s32 %s17, 2
        // Predicated region
        $region53: #{tpu_custom_call.1} parent=51 // pred_check
          %p368 = pneg %p114
        $region54: #{tpu_custom_call.1} parent=51 // pred_check_branch
          %370 = sbr.rel (%p368) target = $region56
        $region55: #{tpu_custom_call.1} parent=51 // pred_region
          %s371 = sand.u32 %s99, 1
          %s372 = scalar_lea.sflag [#allocation7], %s371
          %s373 = sand.u32 %s99, 1
          %s374 = scalar_lea.vmem [#allocation10], %s373
          %375 = dma.done %s372, 16
        $region56: #{tpu_custom_call.1} parent=51 // pred_fallthru
          _
      $region52: #{tpu_custom_call.1} parent=5 // pred_fallthru
        _
    $region6: #{tpu_custom_call.1} parent=1 // loop_footer
      %s21 = sadd.s32 1, %s17
    $region7: #{tpu_custom_call.1} parent=1 // loop_footer_branch
      %16 = sbr.rel target = $region3
    $region8: #{tpu_custom_call.1} parent=1 // loop_exit
      _
    %376 = vsyncpa [#allocation6], 1
    %s377 = scalar_lea.sflag [#allocation6], 1
    %378 = vsyncpa %s377, 1
    %379 = vsyncpa [#allocation9], 1
    %s380 = scalar_lea.sflag [#allocation9], 1
    %381 = vsyncpa %s380, 1
    %382 = vsyncpa [#allocation7], 1
    %s383 = scalar_lea.sflag [#allocation7], 1
    %384 = vsyncpa %s383, 1

</llo_original>
